<compile_context>
chip_gen: v7x
topology: tpu7x:2x2x1
jax: 0.10.0
libtpu: 0.0.40
codegen_flags: <defaults>
</compile_context>

<pallas_src>
import jax
import jax.numpy as jnp
from jax.experimental import pallas as pl
from jax.experimental.pallas import tpu as pltpu


def critic_kernel(s_ref, a_ref, w1_ref, w2_ref, b12_ref, w3_ref, b3_ref, out_ref):
    # Two tiny MXU matmuls on separate, un-copied inputs: (bb, 30) hidden.
    h = jnp.dot(s_ref[...], w1_ref[...], preferred_element_type=jnp.float32)
    h = h + jnp.dot(a_ref[...], w2_ref[...], preferred_element_type=jnp.float32)
    # Folded bias + ReLU on the VPU.
    h = jnp.maximum(h + b12_ref[...], 0.0)
    # 30 -> 1 projection off the MXU: VPU multiply + XLU lane reduction,
    # plus an SMEM scalar bias.
    q = jnp.sum(h * w3_ref[...], axis=-1, keepdims=True) + b3_ref[0]
    out_ref[...] = q.astype(out_ref.dtype)


def _auto_num_blocks(batch):
    """1 block (grid=(1,)) everywhere except large batches on dual-TC v7x."""
    if batch <= 512:
        return 1
    try:
        kind = jax.devices()[0].device_kind.lower()
    except Exception:
        kind = ""
    return 2 if "v7" in kind else 1


def critic_forward(s, a, packed, *, n_blocks=None):
    """s: (B, N_STATES) f32, a: (B, N_ACTIONS) f32 -> (B, 1) f32."""
    w1, w2, b12, w3_row, b3 = packed
    B = s.shape[0]
    n_s = s.shape[1]
    n_a = a.shape[1]

    if n_blocks is None:
        n_blocks = _auto_num_blocks(B)

    if n_blocks <= 1:
        # Single block equal to the full batch: no padding, no extra grid steps.
        bb = B
        Bp = B
    else:
        # Balanced blocks, 8-sublane aligned; padding is at most 8*n_blocks-1 rows.
        bb = ((B + n_blocks - 1) // n_blocks + 7) // 8 * 8
        Bp = n_blocks * bb
        if Bp != B:
            pad = Bp - B
            s = jnp.pad(s, ((0, pad), (0, 0)))
            a = jnp.pad(a, ((0, pad), (0, 0)))

    grid = (Bp // bb,)

    out = pl.pallas_call(
        critic_kernel,
        out_shape=jax.ShapeDtypeStruct((Bp, 1), jnp.float32),
        grid=grid,
        in_specs=[
            pl.BlockSpec((bb, n_s), lambda i: (i, 0)),        # s batch block
            pl.BlockSpec((bb, n_a), lambda i: (i, 0)),        # a batch block
            pl.BlockSpec(w1.shape, lambda i: (0, 0)),         # fc1 weight (n_s, 30)
            pl.BlockSpec(w2.shape, lambda i: (0, 0)),         # fc2 weight (n_a, 30)
            pl.BlockSpec(b12.shape, lambda i: (0, 0)),        # folded bias (1, 30)
            pl.BlockSpec(w3_row.shape, lambda i: (0, 0)),     # out weight row (1, 30)
            pl.BlockSpec(memory_space=pltpu.MemorySpace.SMEM),  # out bias, scalar in SMEM
        ],
        out_specs=pl.BlockSpec((bb, 1), lambda i: (i, 0)),
        compiler_params=pltpu.CompilerParams(
            dimension_semantics=("parallel",)),
    )(s, a, w1, w2, b12, w3_row, b3)

    return out[:B]


def init_params(key, n_states, n_actions, hidden=30):
    """Mirror the PyTorch module: weights ~ Normal(0, 0.1); biases use the
    PyTorch Linear default Uniform(-1/sqrt(fan_in), 1/sqrt(fan_in)).
    Returns raw per-layer params (weights stored transposed (in, out))."""
    k = jax.random.split(key, 6)
    w1 = 0.1 * jax.random.normal(k[0], (n_states, hidden), jnp.float32)
    b1 = jax.random.uniform(k[1], (1, hidden), jnp.float32,
                            -1.0 / n_states ** 0.5, 1.0 / n_states ** 0.5)
    w2 = 0.1 * jax.random.normal(k[2], (n_actions, hidden), jnp.float32)
    b2 = jax.random.uniform(k[3], (1, hidden), jnp.float32,
                            -1.0 / n_actions ** 0.5, 1.0 / n_actions ** 0.5)
    w3 = 0.1 * jax.random.normal(k[4], (hidden, 1), jnp.float32)
    b3 = jax.random.uniform(k[5], (1, 1), jnp.float32,
                            -1.0 / hidden ** 0.5, 1.0 / hidden ** 0.5)
    return (w1, b1, w2, b2, w3, b3)


def pack_params(raw):
    """Host-side packing for the kernel:
       b12 = b1 + b2 (folded), w3 stored as a (1, 30) row for the VPU
       projection, b3 stored as a (1,) SMEM scalar."""
    w1, b1, w2, b2, w3, b3 = raw
    b12 = b1 + b2
    w3_row = w3.reshape(1, -1)
    b3_s = b3.reshape(-1)
    return (w1, w2, b12, w3_row, b3_s)


def reference_forward(s, a, raw):
    """Plain-JAX reference matching the original per-layer formulation."""
    w1, b1, w2, b2, w3, b3 = raw
    x = s @ w1 + b1
    y = a @ w2 + b2
    h = jnp.maximum(x + y, 0.0)
    return h @ w3 + b3


if __name__ == "__main__":
    N_STATES, N_ACTIONS, BATCH = 16, 4, 8

    key = jax.random.PRNGKey(0)
    k_s, k_a, k_p, k_s2, k_a2 = jax.random.split(key, 5)

    raw = init_params(k_p, N_STATES, N_ACTIONS)
    packed = pack_params(raw)

    # Small batch (single full-batch block, no padding, grid=(1,)).
    s = jax.random.normal(k_s, (BATCH, N_STATES), jnp.float32)
    a = jax.random.normal(k_a, (BATCH, N_ACTIONS), jnp.float32)
    q = critic_forward(s, a, packed)
    jax.block_until_ready(q)
    q_ref = reference_forward(s, a, raw)
    assert q.shape == (BATCH, 1)
    assert jnp.allclose(q, q_ref, atol=1e-5, rtol=1e-5), "mismatch vs reference (B=8)"

    # Larger non-multiple-of-8 batch, forcing the 2-block (v7x-style) path:
    # 272 rows -> bb=136->rounded 136? (ceil(272/2)=136 -> 136 already /8) -> no pad,
    # balanced blocks, grid=(2,).
    B2 = 272
    s2 = jax.random.normal(k_s2, (B2, N_STATES), jnp.float32)
    a2 = jax.random.normal(k_a2, (B2, N_ACTIONS), jnp.float32)
    q2 = critic_forward(s2, a2, packed, n_blocks=2)
    jax.block_until_ready(q2)
    q2_ref = reference_forward(s2, a2, raw)
    assert q2.shape == (B2, 1)
    assert jnp.allclose(q2, q2_ref, atol=1e-5, rtol=1e-5), "mismatch vs reference (B=272)"

    # Odd batch on the single-block path (block dims equal full array dims).
    B3 = 37
    s3 = jax.random.normal(k_s2, (B3, N_STATES), jnp.float32)
    a3 = jax.random.normal(k_a2, (B3, N_ACTIONS), jnp.float32)
    q3 = critic_forward(s3, a3, packed, n_blocks=1)
    jax.block_until_ready(q3)
    q3_ref = reference_forward(s3, a3, raw)
    assert jnp.allclose(q3, q3_ref, atol=1e-5, rtol=1e-5), "mismatch vs reference (B=37)"

    print("KERNEL_OK")
</pallas_src>

<mosaic_0001>
module attributes {stable_mosaic.version = 11 : i64} {
  func.func @critic_kernel(%arg0: i32, %arg1: memref<8x16xf32, #tpu.memory_space<vmem>>, %arg2: memref<8x4xf32, #tpu.memory_space<vmem>>, %arg3: memref<16x30xf32, #tpu.memory_space<vmem>>, %arg4: memref<4x30xf32, #tpu.memory_space<vmem>>, %arg5: memref<1x30xf32, #tpu.memory_space<vmem>>, %arg6: memref<1x30xf32, #tpu.memory_space<vmem>>, %arg7: memref<1xf32, #tpu.memory_space<smem>>, %arg8: memref<8x1xf32, #tpu.memory_space<vmem>>) attributes {dimension_semantics = [#tpu.dimension_semantics<parallel>], iteration_bounds = array<i64: 1>, scalar_prefetch = 0 : i64, scratch_operands = 0 : i64, tpu.core_type = #tpu.core_type<tc>, window_params = [{transform_indices = @transform_0, window_bounds = array<i64: 8, 16>}, {transform_indices = @transform_1, window_bounds = array<i64: 8, 4>}, {pipeline_mode = #tpu.pipeline_mode<synchronous>, transform_indices = @transform_2, window_bounds = array<i64: 16, 30>}, {pipeline_mode = #tpu.pipeline_mode<synchronous>, transform_indices = @transform_3, window_bounds = array<i64: 4, 30>}, {pipeline_mode = #tpu.pipeline_mode<synchronous>, transform_indices = @transform_4, window_bounds = array<i64: 1, 30>}, {pipeline_mode = #tpu.pipeline_mode<synchronous>, transform_indices = @transform_5, window_bounds = array<i64: 1, 30>}, {transform_indices = @transform_6, window_bounds = array<i64: 1>}, {transform_indices = @transform_7, window_bounds = array<i64: 8, 1>}]} {
    %c0 = arith.constant 0 : index
    %c0_0 = arith.constant 0 : index
    %0 = vector.load %arg1[%c0, %c0_0] : memref<8x16xf32, #tpu.memory_space<vmem>>, vector<8x16xf32>
    %c0_1 = arith.constant 0 : index
    %c0_2 = arith.constant 0 : index
    %1 = vector.load %arg3[%c0_1, %c0_2] : memref<16x30xf32, #tpu.memory_space<vmem>>, vector<16x30xf32>
    %cst = arith.constant dense<0.000000e+00> : vector<8x30xf32>
    %2 = tpu.matmul %0, %1, %cst {dimension_numbers = #tpu.dot_dimension_numbers<[1], [0], [0], [1], [0, 0, 1, 1], [], []>} : vector<8x16xf32>, vector<16x30xf32>, vector<8x30xf32> -> vector<8x30xf32>
    %c0_3 = arith.constant 0 : index
    %c0_4 = arith.constant 0 : index
    %3 = vector.load %arg2[%c0_3, %c0_4] : memref<8x4xf32, #tpu.memory_space<vmem>>, vector<8x4xf32>
    %c0_5 = arith.constant 0 : index
    %c0_6 = arith.constant 0 : index
    %4 = vector.load %arg4[%c0_5, %c0_6] : memref<4x30xf32, #tpu.memory_space<vmem>>, vector<4x30xf32>
    %cst_7 = arith.constant dense<0.000000e+00> : vector<8x30xf32>
    %5 = tpu.matmul %3, %4, %cst_7 {dimension_numbers = #tpu.dot_dimension_numbers<[1], [0], [0], [1], [0, 0, 1, 1], [], []>} : vector<8x4xf32>, vector<4x30xf32>, vector<8x30xf32> -> vector<8x30xf32>
    %6 = arith.addf %2, %5 : vector<8x30xf32>
    %c0_8 = arith.constant 0 : index
    %c0_9 = arith.constant 0 : index
    %7 = vector.load %arg5[%c0_8, %c0_9] : memref<1x30xf32, #tpu.memory_space<vmem>>, vector<1x30xf32>
    %8 = vector.broadcast %7 : vector<1x30xf32> to vector<8x30xf32>
    %9 = arith.addf %6, %8 : vector<8x30xf32>
    %cst_10 = arith.constant 0.000000e+00 : f32
    %10 = vector.broadcast %cst_10 : f32 to vector<8x30xf32>
    %11 = arith.maximumf %9, %10 : vector<8x30xf32>
    %c0_11 = arith.constant 0 : index
    %c0_12 = arith.constant 0 : index
    %12 = vector.load %arg6[%c0_11, %c0_12] : memref<1x30xf32, #tpu.memory_space<vmem>>, vector<1x30xf32>
    %13 = vector.broadcast %12 : vector<1x30xf32> to vector<8x30xf32>
    %14 = arith.mulf %11, %13 : vector<8x30xf32>
    %cst_13 = arith.constant dense<0.000000e+00> : vector<8xf32>
    %15 = vector.multi_reduction <add>, %14, %cst_13 [1] : vector<8x30xf32> to vector<8xf32>
    %16 = vector.shape_cast %15 : vector<8xf32> to vector<8x1xf32>
    %c0_14 = arith.constant 0 : index
    %17 = memref.load %arg7[%c0_14] : memref<1xf32, #tpu.memory_space<smem>>
    %18 = vector.broadcast %17 : f32 to vector<8x1xf32>
    %19 = arith.addf %16, %18 : vector<8x1xf32>
    %c0_15 = arith.constant 0 : index
    %c0_16 = arith.constant 0 : index
    %20 = vector.load %arg8[%c0_15, %c0_16] : memref<8x1xf32, #tpu.memory_space<vmem>>, vector<8x1xf32>
    tpu.vector_store %arg8[%c0_15, %c0_16], %19 {strides = array<i32>} : memref<8x1xf32, #tpu.memory_space<vmem>>, vector<8x1xf32>,
    return
  }
  func.func @transform_0(%arg0: i32) -> (i32, i32) {
    %c0_i32 = arith.constant 0 : i32
    %c0_i32_0 = arith.constant 0 : i32
    return %arg0, %c0_i32 : i32, i32
  }
  func.func @transform_1(%arg0: i32) -> (i32, i32) {
    %c0_i32 = arith.constant 0 : i32
    %c0_i32_0 = arith.constant 0 : i32
    return %arg0, %c0_i32 : i32, i32
  }
  func.func @transform_2(%arg0: i32) -> (i32, i32) {
    %c0_i32 = arith.constant 0 : i32
    %c0_i32_0 = arith.constant 0 : i32
    %c0_i32_1 = arith.constant 0 : i32
    return %c0_i32, %c0_i32_0 : i32, i32
  }
  func.func @transform_3(%arg0: i32) -> (i32, i32) {
    %c0_i32 = arith.constant 0 : i32
    %c0_i32_0 = arith.constant 0 : i32
    %c0_i32_1 = arith.constant 0 : i32
    return %c0_i32, %c0_i32_0 : i32, i32
  }
  func.func @transform_4(%arg0: i32) -> (i32, i32) {
    %c0_i32 = arith.constant 0 : i32
    %c0_i32_0 = arith.constant 0 : i32
    %c0_i32_1 = arith.constant 0 : i32
    return %c0_i32, %c0_i32_0 : i32, i32
  }
  func.func @transform_5(%arg0: i32) -> (i32, i32) {
    %c0_i32 = arith.constant 0 : i32
    %c0_i32_0 = arith.constant 0 : i32
    %c0_i32_1 = arith.constant 0 : i32
    return %c0_i32, %c0_i32_0 : i32, i32
  }
  func.func @transform_6(%arg0: i32) -> i32 {
    %c0_i32 = arith.constant 0 : i32
    %c0_i32_0 = arith.constant 0 : i32
    return %c0_i32 : i32
  }
  func.func @transform_7(%arg0: i32) -> (i32, i32) {
    %c0_i32 = arith.constant 0 : i32
    %c0_i32_0 = arith.constant 0 : i32
    return %arg0, %c0_i32 : i32, i32
  }
}

</mosaic_0001>

<llo_original>
// kernel: tpu_custom_call.1
$region0: #{tpu_custom_call.1}
  #allocation0 [shape = 'u32[]', space=smem, size = 0x4, offset = 0x4, fixed_abs, tag = 'smem constant byte address 0x4 - core index']
  #allocation1 [shape = 'u32[144,128]{1,0:T(1,128)}', space=vmem, size = 0x12000, scoped, tag = 'internal scratch']
  #allocation2 [shape = 'f32[1]{0:T(128)S(6)}', space=smem, size = 0x200, scoped, tag = 'scoped memory for tpu_custom_call.1']
  %s0 = inlined_call_operand.hbm [shape: f32[8,16], index: 0, kind: input, shape index: {}]
  %s1 = inlined_call_operand.vmem [shape: f32[8,4], index: 1, kind: input, shape index: {}]
  %s2 = inlined_call_operand.vmem [shape: f32[16,30], index: 2, kind: input, shape index: {}]
  %s3 = inlined_call_operand.vmem [shape: f32[4,30], index: 3, kind: input, shape index: {}]
  %s4 = inlined_call_operand.vmem [shape: f32[1,30], index: 4, kind: input, shape index: {}]
  %s5 = inlined_call_operand.vmem [shape: f32[1,30], index: 5, kind: input, shape index: {}]
  %s6 = inlined_call_operand.<no memory space> [shape: f32[1], index: 6, kind: input, shape index: {}]
  %s7 = inlined_call_operand.vmem [shape: f32[8,1], index: 7, kind: output, shape index: {}]
  %s8 = sld [smem:[#allocation0]]
  $region42: #{tpu_custom_call.1} parent=0
    _
  %s10 = ssub.s32 1, %s8
  %s11 = scalar_select 0, %s10, %s8
  %12 = sst [smem:[#allocation2]] %s6
  $region1: #{tpu_custom_call.1} parent=0
    #allocation3 [shape = 'u8[4096]{0}', space=vmem, size = 0x1000, scoped, tag = 'input window, operand 0, single buffered']
    #allocation4 [shape = 's32[1]{0}', space=sflag, size = 0x4, scoped, tag = 'scoped memory for tpu_custom_call.1']
    %13 = vsyncpa [#allocation4], 0
    // Predicated region
    $region2: #{tpu_custom_call.1} parent=1 // pred_check
      _
    $region3: #{tpu_custom_call.1} parent=1 // pred_check_branch
      %15 = sbr.rel (0) target = $region5
    $region4: #{tpu_custom_call.1} parent=1 // pred_region
      %s17 = ssub.s32 128, 128
      %18 = vsyncadd [#allocation4], %s17
      %s20 = sshll.u32 [#allocation3], 4
      %s21 = int_to_ptr.vmem [resolvable:$true] %s20
      %23 = dma.hbm_to_vmem [thread:$0]  %s0, 128, %s21, [#allocation4]
    $region5: #{tpu_custom_call.1} parent=1 // pred_fallthru
      _
    // Predicated region
    $region6: #{tpu_custom_call.1} parent=1 // pred_check
      _
    $region7: #{tpu_custom_call.1} parent=1 // pred_check_branch
      %25 = sbr.rel (0) target = $region9
    $region8: #{tpu_custom_call.1} parent=1 // pred_region
      _
    $region9: #{tpu_custom_call.1} parent=1 // pred_fallthru
      _
    // Predicated region
    $region10: #{tpu_custom_call.1} parent=1 // pred_check
      _
    $region11: #{tpu_custom_call.1} parent=1 // pred_check_branch
      %27 = sbr.rel (0) target = $region13
    $region12: #{tpu_custom_call.1} parent=1 // pred_region
      _
    $region13: #{tpu_custom_call.1} parent=1 // pred_fallthru
      _
    // Predicated region
    $region14: #{tpu_custom_call.1} parent=1 // pred_check
      _
    $region15: #{tpu_custom_call.1} parent=1 // pred_check_branch
      %29 = sbr.rel (0) target = $region17
    $region16: #{tpu_custom_call.1} parent=1 // pred_region
      _
    $region17: #{tpu_custom_call.1} parent=1 // pred_fallthru
      _
    // Predicated region
    $region18: #{tpu_custom_call.1} parent=1 // pred_check
      _
    $region19: #{tpu_custom_call.1} parent=1 // pred_check_branch
      %31 = sbr.rel (0) target = $region21
    $region20: #{tpu_custom_call.1} parent=1 // pred_region
      _
    $region21: #{tpu_custom_call.1} parent=1 // pred_fallthru
      _
    // Predicated region
    $region22: #{tpu_custom_call.1} parent=1 // pred_check
      _
    $region23: #{tpu_custom_call.1} parent=1 // pred_check_branch
      %33 = sbr.rel (0) target = $region25
    $region24: #{tpu_custom_call.1} parent=1 // pred_region
      _
    $region25: #{tpu_custom_call.1} parent=1 // pred_fallthru
      _
    // Predicated region
    $region26: #{tpu_custom_call.1} parent=1 // pred_check
      _
    $region27: #{tpu_custom_call.1} parent=1 // pred_check_branch
      %35 = sbr.rel (0) target = $region29
    $region28: #{tpu_custom_call.1} parent=1 // pred_region
      _
    $region29: #{tpu_custom_call.1} parent=1 // pred_fallthru
      _
    // Predicated region
    $region30: #{tpu_custom_call.1} parent=1 // pred_check
      _
    $region31: #{tpu_custom_call.1} parent=1 // pred_check_branch
      %37 = sbr.rel (0) target = $region33
    $region32: #{tpu_custom_call.1} parent=1 // pred_region
      %38 = dma.done [#allocation4], 128
    $region33: #{tpu_custom_call.1} parent=1 // pred_fallthru
      _
    %v39 = vld [vmem:[#allocation3] sm:$0xff]
    %v40 = vld [vmem:[%s2] sm:$0xff]
    %v41 = vld [vmem:[%s2 + $0x8] sm:$0xff]
    %v42 = vld [vmem:[%s1] sm:$0xff]
    %v43 = vld [vmem:[%s3] sm:$0xf]
    %vm44 = vcmask 31744
    %v46 = vsel %vm44, %v42, 0
    %vm48 = vcmask 1043456
    %v50 = vsel %vm48, %v43, 0
    %52 = vmatprep.subr.mxu0 0.0
    %53 = vmatpush1.msra.mxu0 %v50
    %54 = vmatprep.subr.mxu0 0.0
    %55 = vmatpush1.msra.mxu0 0.0
    %56 = vmatprep.subr.mxu0 0.0
    %57 = vmatpush1.msra.mxu0 0.0
    %58 = vmatprep.subr.mxu0 0.0
    %59 = vmatpush1.msra.mxu0 0.0
    %60 = vmatprep.subr.mxu0 0.0
    %61 = vmatpush1.msra.mxu0 0.0
    %62 = vmatprep.subr.mxu0 0.0
    %63 = vmatpush1.msra.mxu0 0.0
    %64 = vmatprep.subr.mxu0 0.0
    %65 = vmatpush1.msra.mxu0 0.0
    %66 = vmatprep.subr.mxu0 0.0
    %67 = vmatpush1.msra.mxu0 0.0
    %68 = vmatprep.subr.mxu0 0.0
    %69 = vmatpush1.msra.mxu0 0.0
    %70 = vmatprep.subr.mxu0 0.0
    %71 = vmatpush1.msra.mxu0 0.0
    %72 = vmatprep.subr.mxu0 0.0
    %73 = vmatpush1.msra.mxu0 0.0
    %74 = vmatprep.subr.mxu0 0.0
    %75 = vmatpush1.msra.mxu0 0.0
    %76 = vmatprep.subr.mxu0 0.0
    %77 = vmatpush1.msra.mxu0 0.0
    %78 = vmatprep.subr.mxu0 0.0
    %79 = vmatpush1.msra.mxu0 0.0
    %80 = vmatprep.subr.mxu0 0.0
    %81 = vmatpush1.msra.mxu0 0.0
    %82 = vmatprep.subr.mxu0 0.0
    %83 = vmatpush1.msra.mxu0 0.0
    %84 = vmatprep.subr.mxu0 0.0
    %85 = vmatpush1.msra.mxu0 0.0
    %86 = vmatprep.subr.mxu0 0.0
    %87 = vmatpush1.msra.mxu0 0.0
    %88 = vmatprep.subr.mxu0 0.0
    %89 = vmatpush1.msra.mxu0 0.0
    %90 = vmatprep.subr.mxu0 0.0
    %91 = vmatpush1.msra.mxu0 0.0
    %92 = vmatprep.subr.mxu0 0.0
    %93 = vmatpush1.msra.mxu0 0.0
    %94 = vmatprep.subr.mxu0 0.0
    %95 = vmatpush1.msra.mxu0 0.0
    %96 = vmatprep.subr.mxu0 0.0
    %97 = vmatpush1.msra.mxu0 0.0
    %98 = vmatprep.subr.mxu0 0.0
    %99 = vmatpush1.msra.mxu0 0.0
    %100 = vmatprep.subr.mxu0 0.0
    %101 = vmatpush1.msra.mxu0 0.0
    %102 = vmatprep.subr.mxu0 0.0
    %103 = vmatpush1.msra.mxu0 0.0
    %104 = vmatprep.subr.mxu0 0.0
    %105 = vmatpush1.msra.mxu0 0.0
    %106 = vmatprep.subr.mxu0 0.0
    %107 = vmatpush1.msra.mxu0 0.0
    %108 = vmatprep.subr.mxu0 0.0
    %109 = vmatpush1.msra.mxu0 0.0
    %110 = vmatprep.subr.mxu0 0.0
    %111 = vmatpush1.msra.mxu0 0.0
    %112 = vmatprep.subr.mxu0 0.0
    %113 = vmatpush1.msra.mxu0 0.0
    %114 = vmatprep.subr.mxu0 0.0
    %115 = vmatpush1.msra.mxu0 0.0
    %116 = vmatprep.mubr.f32.mxu0 0.0
    %117 = vmatmul.mubr.f32.gmra.mrb[0].mxu0 %v46
    %v118 = vpop.f32.mrb[0].mxu0
    %v119 = vadd.f32 0.0, %v118
    %v120 = vpop.f32.mrb[0].mxu0
    %121 = vdwg.mxu0
    %vm122 = vcmask 130048
    %v124 = vsel %vm122, %v39, 0
    %126 = vmatprep.subr.mxu0 0.0
    %127 = vmatpush1.msra.mxu0 %v40
    %128 = vmatprep.subr.mxu0 0.0
    %129 = vmatpush1.msra.mxu0 %v41
    %130 = vmatprep.subr.mxu0 0.0
    %131 = vmatpush1.msra.mxu0 0.0
    %132 = vmatprep.subr.mxu0 0.0
    %133 = vmatpush1.msra.mxu0 0.0
    %134 = vmatprep.subr.mxu0 0.0
    %135 = vmatpush1.msra.mxu0 0.0
    %136 = vmatprep.subr.mxu0 0.0
    %137 = vmatpush1.msra.mxu0 0.0
    %138 = vmatprep.subr.mxu0 0.0
    %139 = vmatpush1.msra.mxu0 0.0
    %140 = vmatprep.subr.mxu0 0.0
    %141 = vmatpush1.msra.mxu0 0.0
    %142 = vmatprep.subr.mxu0 0.0
    %143 = vmatpush1.msra.mxu0 0.0
    %144 = vmatprep.subr.mxu0 0.0
    %145 = vmatpush1.msra.mxu0 0.0
    %146 = vmatprep.subr.mxu0 0.0
    %147 = vmatpush1.msra.mxu0 0.0
    %148 = vmatprep.subr.mxu0 0.0
    %149 = vmatpush1.msra.mxu0 0.0
    %150 = vmatprep.subr.mxu0 0.0
    %151 = vmatpush1.msra.mxu0 0.0
    %152 = vmatprep.subr.mxu0 0.0
    %153 = vmatpush1.msra.mxu0 0.0
    %154 = vmatprep.subr.mxu0 0.0
    %155 = vmatpush1.msra.mxu0 0.0
    %156 = vmatprep.subr.mxu0 0.0
    %157 = vmatpush1.msra.mxu0 0.0
    %158 = vmatprep.subr.mxu0 0.0
    %159 = vmatpush1.msra.mxu0 0.0
    %160 = vmatprep.subr.mxu0 0.0
    %161 = vmatpush1.msra.mxu0 0.0
    %162 = vmatprep.subr.mxu0 0.0
    %163 = vmatpush1.msra.mxu0 0.0
    %164 = vmatprep.subr.mxu0 0.0
    %165 = vmatpush1.msra.mxu0 0.0
    %166 = vmatprep.subr.mxu0 0.0
    %167 = vmatpush1.msra.mxu0 0.0
    %168 = vmatprep.subr.mxu0 0.0
    %169 = vmatpush1.msra.mxu0 0.0
    %170 = vmatprep.subr.mxu0 0.0
    %171 = vmatpush1.msra.mxu0 0.0
    %172 = vmatprep.subr.mxu0 0.0
    %173 = vmatpush1.msra.mxu0 0.0
    %174 = vmatprep.subr.mxu0 0.0
    %175 = vmatpush1.msra.mxu0 0.0
    %176 = vmatprep.subr.mxu0 0.0
    %177 = vmatpush1.msra.mxu0 0.0
    %178 = vmatprep.subr.mxu0 0.0
    %179 = vmatpush1.msra.mxu0 0.0
    %180 = vmatprep.subr.mxu0 0.0
    %181 = vmatpush1.msra.mxu0 0.0
    %182 = vmatprep.subr.mxu0 0.0
    %183 = vmatpush1.msra.mxu0 0.0
    %184 = vmatprep.subr.mxu0 0.0
    %185 = vmatpush1.msra.mxu0 0.0
    %186 = vmatprep.subr.mxu0 0.0
    %187 = vmatpush1.msra.mxu0 0.0
    %188 = vmatprep.subr.mxu0 0.0
    %189 = vmatpush1.msra.mxu0 0.0
    %190 = vmatprep.mubr.f32.mxu0 0.0
    %191 = vmatmul.mubr.f32.gmra.mrb[0].mxu0 %v124
    %v192 = vpop.f32.mrb[0].mxu0
    %v193 = vadd.f32 %v119, %v192
    %v194 = vpop.f32.mrb[0].mxu0
    %195 = vdwg.mxu0
    %v196 = vld [vmem:[%s4] sm:$0x1]
    %v198 = vlaneseq
    %v199 = vshrl.u32 %v198, 7
    %v200 = vsub.s32 0, %v199
    %v201 = vrot.slane %v196, %v200
    %v203 = vadd.f32 %v193, %v201
    %v204 = vmax.f32 %v203, 0.0
    %v205 = vld [vmem:[%s5] sm:$0x1]
    %v207 = vlaneseq
    %v208 = vshrl.u32 %v207, 7
    %v209 = vsub.s32 0, %v208
    %v210 = vrot.slane %v205, %v209
    %v212 = vmul.f32 %v204, %v210
    %vm213 = vcmask 244736
    %v214 = vsel %vm213, %v212, 0.0
    %215 = vadd.xlane.f32.xlu0 %v214
    %v216 = vpop.xlane.xlu0 %215
    %s217 = sld [smem:[#allocation2]]
    %v218 = vstv %s217
    %v219 = vadd.f32 %v216, %v218
    %vm220 = vcmask 7168
    %221 = vst.msk [vmem:[%s7] sm:$0xff] %vm220, %v219
    // Predicated region
    $region34: #{tpu_custom_call.1} parent=1 // pred_check
      _
    $region35: #{tpu_custom_call.1} parent=1 // pred_check_branch
      %223 = sbr.rel (0) target = $region37
    $region36: #{tpu_custom_call.1} parent=1 // pred_region
      _
    $region37: #{tpu_custom_call.1} parent=1 // pred_fallthru
      _
    // Predicated region
    $region38: #{tpu_custom_call.1} parent=1 // pred_check
      _
    $region39: #{tpu_custom_call.1} parent=1 // pred_check_branch
      %225 = sbr.rel (0) target = $region41
    $region40: #{tpu_custom_call.1} parent=1 // pred_region
      _
    $region41: #{tpu_custom_call.1} parent=1 // pred_fallthru
      _
    %226 = vsyncpa [#allocation4], 1

</llo_original>
